<compile_context>
chip_gen: v7x
topology: tpu7x:2x2x1
jax: 0.10.0
libtpu: 0.0.40
codegen_flags: <defaults>
</compile_context>

<pallas_src>
import jax
import jax.numpy as jnp
from jax.experimental import pallas as pl
from jax.experimental.pallas import tpu as pltpu


NEG_BIG = -1000000000.0  # sentinel used by the PyTorch module


def _masked_maxpool_linear_kernel(hs_ref, maskbias_ref, w_ref, b_ref,
                                  out_ref, acc_ref):
    """One (batch-tile, seq-tile) grid step of masked max-pool + linear head.

    hs_ref:       (TB, TS, H) native-dtype hidden-state tile (streamed)
    maskbias_ref: (TB, TS, 1) f32 additive mask: 0 where valid, -1e9 where pad
    w_ref:        (H, L)      f32 linear weight (pre-transposed), resident
    b_ref:        (1, L)      f32 linear bias, resident
    out_ref:      (TB, L)     f32 logits (resident across the seq axis)
    acc_ref:      (TB, H)     f32 running-max accumulator (VMEM scratch)
    """
    s = pl.program_id(1)

    # (Re)initialize the running max at the first seq tile of each batch tile.
    @pl.when(s == 0)
    def _():
        acc_ref[...] = jnp.full_like(acc_ref, NEG_BIG)

    # Additive mask (one VPU add) instead of compare+select; padded positions
    # are pushed to ~-1e9 and never win the max (matches the PyTorch
    # `x[mask == 0] = -1e9` + max semantics whenever a row has >= 1 valid
    # token, which the tokenizer/AutoModel contract guarantees).
    hs = hs_ref[...].astype(jnp.float32)                 # (TB, TS, H)
    masked = hs + maskbias_ref[...]                      # broadcast over H
    tile_max = jnp.max(masked, axis=1)                   # (TB, H)
    acc_ref[...] = jnp.maximum(acc_ref[...], tile_max)

    # Epilogue once per batch tile: dropout is identity at inference; tiny
    # MXU matmul + bias on the pooled embedding.
    @pl.when(s == pl.num_programs(1) - 1)
    def _():
        logits = jnp.dot(acc_ref[...], w_ref[...],
                         preferred_element_type=jnp.float32)   # (TB, L)
        out_ref[...] = logits + b_ref[...]


def _pick_tile(dim, target, align=8):
    """Largest divisor of `dim` that is <= target and (a multiple of `align`
    or equal to `dim`) -- keeps block shapes (8,128)-legal."""
    if dim <= target:
        return dim
    for t in range(min(int(target), dim), 0, -1):
        if dim % t == 0 and t % align == 0:
            return t
    return dim


def max_pooling_model_forward(last_hidden_state, attention_mask, weight, bias,
                              *, batch_tile=None, seq_tile=None,
                              hs_tile_budget_bytes=4 << 20):
    """Masked max-pool over the sequence axis + linear head as one Pallas kernel.

    last_hidden_state: (B, S, H) transformer output, streamed in native dtype.
    attention_mask:    (B, S) 0/1 mask.
    weight:            (num_labels, H) PyTorch nn.Linear weight.
    bias:              (num_labels,)   PyTorch nn.Linear bias.
    """
    B, S, H = last_hidden_state.shape
    L = weight.shape[0]
    itemsize = jnp.dtype(last_hidden_state.dtype).itemsize

    # ---- tile selection: stream (TB, TS, H) hidden-state tiles -------------
    TB = batch_tile if batch_tile is not None else _pick_tile(B, 8)
    if seq_tile is not None:
        TS = seq_tile
    else:
        ts_target = max(8, hs_tile_budget_bytes // max(1, TB * H * itemsize))
        TS = _pick_tile(S, ts_target)
    assert B % TB == 0 and S % TS == 0, "tiles must divide (B, S)"

    # ---- parameter plumbing (tiny tensors) ----------------------------------
    # TODO(synk): in a real serving path, pre-transpose/cast the head params
    # once at load time instead of per call.
    w_t = jnp.transpose(weight).astype(jnp.float32)          # (H, L)
    b2d = bias.reshape(1, L).astype(jnp.float32)             # (1, L)
    # Additive mask: 0 where valid, -1e9 where padded.
    mask_bias = ((attention_mask.astype(jnp.float32) - 1.0)
                 * 1000000000.0).reshape(B, S, 1)            # (B, S, 1)

    grid = (B // TB, S // TS)

    grid_spec = pltpu.PrefetchScalarGridSpec(
        num_scalar_prefetch=0,
        grid=grid,
        in_specs=[
            pl.BlockSpec((TB, TS, H), lambda b, s: (b, s, 0)),   # hidden states
            pl.BlockSpec((TB, TS, 1), lambda b, s: (b, s, 0)),   # additive mask
            pl.BlockSpec((H, L), lambda b, s: (0, 0)),           # weight (resident)
            pl.BlockSpec((1, L), lambda b, s: (0, 0)),           # bias (resident)
        ],
        out_specs=pl.BlockSpec((TB, L), lambda b, s: (b, 0)),    # same block over s
        scratch_shapes=[pltpu.VMEM((TB, H), jnp.float32)],       # running max
    )

    # VMEM budget: double-buffered streaming inputs + resident params/acc.
    hs_tile_bytes = TB * TS * H * itemsize
    mask_tile_bytes = TB * TS * 4
    resident_bytes = (H * L + L + TB * H + TB * L) * 4
    needed = 2 * (hs_tile_bytes + mask_tile_bytes) + resident_bytes + (2 << 20)
    vmem_limit = int(min(max(needed, 32 << 20), 60 << 20))  # stay under v7x 64 MiB

    cost = pl.CostEstimate(
        flops=int(2 * B * H * L),
        transcendentals=0,
        bytes_accessed=int(B * S * H * itemsize + B * S * 4
                           + H * L * 4 + L * 4 + B * L * 4),
    )

    return pl.pallas_call(
        _masked_maxpool_linear_kernel,
        out_shape=jax.ShapeDtypeStruct((B, L), jnp.float32),
        grid_spec=grid_spec,
        compiler_params=pltpu.CompilerParams(
            dimension_semantics=("parallel", "arbitrary"),
            vmem_limit_bytes=vmem_limit,
        ),
        cost_estimate=cost,
    )(last_hidden_state, mask_bias, w_t, b2d)


def _reference(last_hidden_state, attention_mask, weight, bias):
    """Pure-JAX reference mirroring the PyTorch forward (eval mode)."""
    mask = attention_mask.astype(jnp.float32)[:, :, None]
    masked = jnp.where(mask == 0.0, NEG_BIG,
                       last_hidden_state.astype(jnp.float32))
    max_emb = jnp.max(masked, axis=1)
    return max_emb @ weight.T.astype(jnp.float32) + bias.astype(jnp.float32)


if __name__ == "__main__":
    def run_case(B, S, H, L, key, **tile_kwargs):
        k_hs, k_len, k_w, k_b = jax.random.split(key, 4)
        # Synthetic transformer output (stands in for AutoModel output).
        hs = jax.random.normal(k_hs, (B, S, H), dtype=jnp.float32)
        # Attention mask with at least one valid token per row.
        valid_len = jax.random.randint(k_len, (B,), 1, S + 1)
        mask = (jnp.arange(S)[None, :] < valid_len[:, None]).astype(jnp.int32)
        # Deterministic nn.Linear-style init: U(-1/sqrt(H), 1/sqrt(H)).
        bound = 1.0 / jnp.sqrt(jnp.float32(H))
        w = jax.random.uniform(k_w, (L, H), jnp.float32, -bound, bound)
        b = jax.random.uniform(k_b, (L,), jnp.float32, -bound, bound)

        out = max_pooling_model_forward(hs, mask, w, b, **tile_kwargs)
        out = jax.block_until_ready(out)
        ref = _reference(hs, mask, w, b)
        assert out.shape == (B, L)
        assert jnp.allclose(out, ref, atol=1e-4, rtol=1e-4), "mismatch vs reference"

    key = jax.random.PRNGKey(0)
    k1, k2 = jax.random.split(key)
    # Toy module-consistent shapes: batch=2, maxlen=8, hidden=32, num_labels=4.
    run_case(2, 8, 32, 4, k1)
    # Multi-tile path: grid=(2, 2) exercising the running-max accumulator.
    run_case(16, 16, 32, 4, k2, batch_tile=8, seq_tile=8)

    print("KERNEL_OK")
</pallas_src>

<mosaic_0001>
module attributes {stable_mosaic.version = 11 : i64} {
  func.func @_masked_maxpool_linear_kernel(%arg0: i32, %arg1: i32, %arg2: memref<2x8x32xf32, #tpu.memory_space<vmem>>, %arg3: memref<2x8x1xf32, #tpu.memory_space<vmem>>, %arg4: memref<32x4xf32, #tpu.memory_space<vmem>>, %arg5: memref<1x4xf32, #tpu.memory_space<vmem>>, %arg6: memref<2x4xf32, #tpu.memory_space<vmem>>, %arg7: memref<2x32xf32, #tpu.memory_space<vmem>>) attributes {dimension_semantics = [#tpu.dimension_semantics<parallel>, #tpu.dimension_semantics<arbitrary>], iteration_bounds = array<i64: 1, 1>, scalar_prefetch = 0 : i64, scratch_operands = 1 : i64, tpu.core_type = #tpu.core_type<tc>, window_params = [{transform_indices = @transform_0, window_bounds = array<i64: 2, 8, 32>}, {transform_indices = @transform_1, window_bounds = array<i64: 2, 8, 1>}, {pipeline_mode = #tpu.pipeline_mode<synchronous>, transform_indices = @transform_2, window_bounds = array<i64: 32, 4>}, {pipeline_mode = #tpu.pipeline_mode<synchronous>, transform_indices = @transform_3, window_bounds = array<i64: 1, 4>}, {transform_indices = @transform_4, window_bounds = array<i64: 2, 4>}]} {
    %c0_i32 = arith.constant 0 : i32
    %0 = arith.cmpi eq, %arg1, %c0_i32 : i32
    %1 = arith.extui %0 : i1 to i32
    %c0_i32_0 = arith.constant 0 : i32
    %2 = arith.cmpi ne, %1, %c0_i32_0 : i32
    scf.if %2 {
      %cst_12 = arith.constant -1.000000e+09 : f32
      %14 = vector.broadcast %cst_12 : f32 to vector<2x32xf32>
      %c0_13 = arith.constant 0 : index
      %c0_14 = arith.constant 0 : index
      %15 = vector.load %arg7[%c0_13, %c0_14] : memref<2x32xf32, #tpu.memory_space<vmem>>, vector<2x32xf32>
      tpu.vector_store %arg7[%c0_13, %c0_14], %14 {strides = array<i32>} : memref<2x32xf32, #tpu.memory_space<vmem>>, vector<2x32xf32>,
    } else {
    }
    %c0 = arith.constant 0 : index
    %c0_1 = arith.constant 0 : index
    %c0_2 = arith.constant 0 : index
    %3 = vector.load %arg2[%c0, %c0_1, %c0_2] : memref<2x8x32xf32, #tpu.memory_space<vmem>>, vector<2x8x32xf32>
    %c0_3 = arith.constant 0 : index
    %c0_4 = arith.constant 0 : index
    %c0_5 = arith.constant 0 : index
    %4 = vector.load %arg3[%c0_3, %c0_4, %c0_5] : memref<2x8x1xf32, #tpu.memory_space<vmem>>, vector<2x8x1xf32>
    %5 = vector.broadcast %4 : vector<2x8x1xf32> to vector<2x8x32xf32>
    %6 = arith.addf %3, %5 : vector<2x8x32xf32>
    %cst = arith.constant dense<0xFF800000> : vector<2x32xf32>
    %7 = vector.multi_reduction <maximumf>, %6, %cst [1] : vector<2x8x32xf32> to vector<2x32xf32>
    %c0_6 = arith.constant 0 : index
    %c0_7 = arith.constant 0 : index
    %8 = vector.load %arg7[%c0_6, %c0_7] : memref<2x32xf32, #tpu.memory_space<vmem>>, vector<2x32xf32>
    %9 = arith.maximumf %8, %7 : vector<2x32xf32>
    %c0_8 = arith.constant 0 : index
    %c0_9 = arith.constant 0 : index
    %10 = vector.load %arg7[%c0_8, %c0_9] : memref<2x32xf32, #tpu.memory_space<vmem>>, vector<2x32xf32>
    tpu.vector_store %arg7[%c0_8, %c0_9], %9 {strides = array<i32>} : memref<2x32xf32, #tpu.memory_space<vmem>>, vector<2x32xf32>,
    %c0_i32_10 = arith.constant 0 : i32
    %11 = arith.cmpi eq, %arg1, %c0_i32_10 : i32
    %12 = arith.extui %11 : i1 to i32
    %c0_i32_11 = arith.constant 0 : i32
    %13 = arith.cmpi ne, %12, %c0_i32_11 : i32
    scf.if %13 {
      %c0_12 = arith.constant 0 : index
      %c0_13 = arith.constant 0 : index
      %14 = vector.load %arg7[%c0_12, %c0_13] : memref<2x32xf32, #tpu.memory_space<vmem>>, vector<2x32xf32>
      %c0_14 = arith.constant 0 : index
      %c0_15 = arith.constant 0 : index
      %15 = vector.load %arg4[%c0_14, %c0_15] : memref<32x4xf32, #tpu.memory_space<vmem>>, vector<32x4xf32>
      %cst_16 = arith.constant dense<0.000000e+00> : vector<2x4xf32>
      %16 = tpu.matmul %14, %15, %cst_16 {dimension_numbers = #tpu.dot_dimension_numbers<[1], [0], [0], [1], [0, 0, 1, 1], [], []>} : vector<2x32xf32>, vector<32x4xf32>, vector<2x4xf32> -> vector<2x4xf32>
      %c0_17 = arith.constant 0 : index
      %c0_18 = arith.constant 0 : index
      %17 = vector.load %arg5[%c0_17, %c0_18] : memref<1x4xf32, #tpu.memory_space<vmem>>, vector<1x4xf32>
      %18 = vector.broadcast %17 : vector<1x4xf32> to vector<2x4xf32>
      %19 = arith.addf %16, %18 : vector<2x4xf32>
      %c0_19 = arith.constant 0 : index
      %c0_20 = arith.constant 0 : index
      %20 = vector.load %arg6[%c0_19, %c0_20] : memref<2x4xf32, #tpu.memory_space<vmem>>, vector<2x4xf32>
      tpu.vector_store %arg6[%c0_19, %c0_20], %19 {strides = array<i32>} : memref<2x4xf32, #tpu.memory_space<vmem>>, vector<2x4xf32>,
    } else {
    }
    return
  }
  func.func @transform_0(%arg0: i32, %arg1: i32) -> (i32, i32, i32) {
    %c0_i32 = arith.constant 0 : i32
    %c0_i32_0 = arith.constant 0 : i32
    return %arg0, %arg1, %c0_i32 : i32, i32, i32
  }
  func.func @transform_1(%arg0: i32, %arg1: i32) -> (i32, i32, i32) {
    %c0_i32 = arith.constant 0 : i32
    %c0_i32_0 = arith.constant 0 : i32
    return %arg0, %arg1, %c0_i32 : i32, i32, i32
  }
  func.func @transform_2(%arg0: i32, %arg1: i32) -> (i32, i32) {
    %c0_i32 = arith.constant 0 : i32
    %c0_i32_0 = arith.constant 0 : i32
    %c0_i32_1 = arith.constant 0 : i32
    return %c0_i32, %c0_i32_0 : i32, i32
  }
  func.func @transform_3(%arg0: i32, %arg1: i32) -> (i32, i32) {
    %c0_i32 = arith.constant 0 : i32
    %c0_i32_0 = arith.constant 0 : i32
    %c0_i32_1 = arith.constant 0 : i32
    return %c0_i32, %c0_i32_0 : i32, i32
  }
  func.func @transform_4(%arg0: i32, %arg1: i32) -> (i32, i32) {
    %c0_i32 = arith.constant 0 : i32
    %c0_i32_0 = arith.constant 0 : i32
    return %arg0, %c0_i32 : i32, i32
  }
}

</mosaic_0001>

<llo_original>
// kernel: tpu_custom_call.1
$region0: #{tpu_custom_call.1}
  #allocation0 [shape = 'u32[]', space=smem, size = 0x4, offset = 0x4, fixed_abs, tag = 'smem constant byte address 0x4 - core index']
  #allocation1 [shape = 'u32[144,128]{1,0:T(1,128)}', space=vmem, size = 0x12000, scoped, tag = 'internal scratch']
  #allocation2 [shape = 'f32[2,32]{1,0:T(2,128)}', space=vmem, size = 0x400, scoped, tag = 'scratch operand']
  %s0 = inlined_call_operand.vmem [shape: f32[2,8,32], index: 0, kind: input, shape index: {}]
  %s1 = inlined_call_operand.vmem [shape: f32[2,8,1], index: 1, kind: input, shape index: {}]
  %s2 = inlined_call_operand.vmem [shape: f32[32,4], index: 2, kind: input, shape index: {}]
  %s3 = inlined_call_operand.vmem [shape: f32[1,4], index: 3, kind: input, shape index: {}]
  %s4 = inlined_call_operand.hbm [shape: f32[2,4], index: 4, kind: output, shape index: {}]
  %s5 = sld [smem:[#allocation0]]
  $region34: #{tpu_custom_call.1} parent=0
    _
  %s7 = ssub.s32 1, %s5
  %s8 = scalar_select 0, %s7, %s5
  $region1: #{tpu_custom_call.1} parent=0
    #allocation3 [shape = 'u8[1024]{0}', space=vmem, size = 0x400, scoped, tag = 'output window, operand 0, single buffered']
    #allocation4 [shape = 's32[1]{0}', space=sflag, size = 0x4, scoped, tag = 'scoped memory for tpu_custom_call.1']
    %9 = vsyncpa [#allocation4], 0
    // Predicated region
    $region2: #{tpu_custom_call.1} parent=1 // pred_check
      _
    $region3: #{tpu_custom_call.1} parent=1 // pred_check_branch
      %11 = sbr.rel (0) target = $region5
    $region4: #{tpu_custom_call.1} parent=1 // pred_region
      _
    $region5: #{tpu_custom_call.1} parent=1 // pred_fallthru
      _
    // Predicated region
    $region6: #{tpu_custom_call.1} parent=1 // pred_check
      _
    $region7: #{tpu_custom_call.1} parent=1 // pred_check_branch
      %13 = sbr.rel (0) target = $region9
    $region8: #{tpu_custom_call.1} parent=1 // pred_region
      _
    $region9: #{tpu_custom_call.1} parent=1 // pred_fallthru
      _
    // Predicated region
    $region10: #{tpu_custom_call.1} parent=1 // pred_check
      _
    $region11: #{tpu_custom_call.1} parent=1 // pred_check_branch
      %15 = sbr.rel (0) target = $region13
    $region12: #{tpu_custom_call.1} parent=1 // pred_region
      _
    $region13: #{tpu_custom_call.1} parent=1 // pred_fallthru
      _
    // Predicated region
    $region14: #{tpu_custom_call.1} parent=1 // pred_check
      _
    $region15: #{tpu_custom_call.1} parent=1 // pred_check_branch
      %17 = sbr.rel (0) target = $region17
    $region16: #{tpu_custom_call.1} parent=1 // pred_region
      _
    $region17: #{tpu_custom_call.1} parent=1 // pred_fallthru
      _
    %p18 = scmp.eq.s32.totalorder 0, 0
    // Predicated region
    $region18: #{tpu_custom_call.1} parent=1 // pred_check
      %p19 = pneg %p18
    $region19: #{tpu_custom_call.1} parent=1 // pred_check_branch
      %21 = sbr.rel (%p19) target = $region21
    $region20: #{tpu_custom_call.1} parent=1 // pred_region
      %vm22 = vcmask 254976
      %23 = vst.msk [vmem:[#allocation2] sm:$0x3] %vm22, -1e+09
    $region21: #{tpu_custom_call.1} parent=1 // pred_fallthru
      _
    %v24 = vld [vmem:[%s0] sm:$0xff]
    %v25 = vld [vmem:[%s0 + $0x8] sm:$0xff]
    %v26 = vld [vmem:[%s1] sm:$0xff]
    %v27 = vld [vmem:[%s1 + $0x8] sm:$0xff]
    %29 = vset.pattern.permute.xlu0 0
    %30 = vperm.xlu0 %29, %v26
    %v31 = vpop.permute.xlu0 %30
    %34 = vset.pattern.permute.xlu0 0
    %35 = vperm.xlu0 %34, %v27
    %v36 = vpop.permute.xlu0 %35
    %v38 = vadd.f32 %v24, %v31
    %v39 = vadd.f32 %v25, %v36
    %vm40 = vcmask 261120
    %v41 = vsel %vm40, %v38, -inf
    %v42 = vrot.slane %v41, 4
    %v43 = vmax.f32 %v41, %v42
    %v44 = vrot.slane %v43, 2
    %v45 = vmax.f32 %v43, %v44
    %v46 = vrot.slane %v45, 1
    %v47 = vmax.f32 %v45, %v46
    %v48 = vsel %vm40, %v39, -inf
    %v49 = vrot.slane %v48, 4
    %v50 = vmax.f32 %v48, %v49
    %v51 = vrot.slane %v50, 2
    %v52 = vmax.f32 %v50, %v51
    %v53 = vrot.slane %v52, 1
    %v54 = vmax.f32 %v52, %v53
    %v55 = vld [vmem:[#allocation2] sm:$0x3]
    %vm58 = vcmask 1041409
    %v59 = vsel %vm58, %v54, %v47
    %v61 = vmax.f32 %v55, %v59
    %vm62 = vcmask 254976
    %63 = vst.msk [vmem:[#allocation2] sm:$0x3] %vm62, %v61
    // Predicated region
    $region22: #{tpu_custom_call.1} parent=1 // pred_check
      %p64 = pneg %p18
    $region23: #{tpu_custom_call.1} parent=1 // pred_check_branch
      %66 = sbr.rel (%p64) target = $region25
    $region24: #{tpu_custom_call.1} parent=1 // pred_region
      %v67 = vld [vmem:[#allocation2] sm:$0x3]
      %v68 = vld [vmem:[%s2] sm:$0xff]
      %v69 = vld [vmem:[%s2 + $0x8] sm:$0xff]
      %v70 = vld [vmem:[%s2 + $0x10] sm:$0xff]
      %v71 = vld [vmem:[%s2 + $0x18] sm:$0xff]
      %v72 = vld [vmem:[%s3] sm:$0x1]
      %v74 = vlaneseq
      %v75 = vshrl.u32 %v74, 7
      %v76 = vsub.s32 0, %v75
      %v77 = vrot.slane %v72, %v76
      %v80 = vsel %vm40, %v67, 0
      %82 = vmatprep.subr.mxu0 0.0
      %83 = vmatpush1.msra.mxu0 %v68
      %84 = vmatprep.subr.mxu0 0.0
      %85 = vmatpush1.msra.mxu0 %v69
      %86 = vmatprep.subr.mxu0 0.0
      %87 = vmatpush1.msra.mxu0 %v70
      %88 = vmatprep.subr.mxu0 0.0
      %89 = vmatpush1.msra.mxu0 %v71
      %90 = vmatprep.subr.mxu0 0.0
      %91 = vmatpush1.msra.mxu0 0.0
      %92 = vmatprep.subr.mxu0 0.0
      %93 = vmatpush1.msra.mxu0 0.0
      %94 = vmatprep.subr.mxu0 0.0
      %95 = vmatpush1.msra.mxu0 0.0
      %96 = vmatprep.subr.mxu0 0.0
      %97 = vmatpush1.msra.mxu0 0.0
      %98 = vmatprep.subr.mxu0 0.0
      %99 = vmatpush1.msra.mxu0 0.0
      %100 = vmatprep.subr.mxu0 0.0
      %101 = vmatpush1.msra.mxu0 0.0
      %102 = vmatprep.subr.mxu0 0.0
      %103 = vmatpush1.msra.mxu0 0.0
      %104 = vmatprep.subr.mxu0 0.0
      %105 = vmatpush1.msra.mxu0 0.0
      %106 = vmatprep.subr.mxu0 0.0
      %107 = vmatpush1.msra.mxu0 0.0
      %108 = vmatprep.subr.mxu0 0.0
      %109 = vmatpush1.msra.mxu0 0.0
      %110 = vmatprep.subr.mxu0 0.0
      %111 = vmatpush1.msra.mxu0 0.0
      %112 = vmatprep.subr.mxu0 0.0
      %113 = vmatpush1.msra.mxu0 0.0
      %114 = vmatprep.subr.mxu0 0.0
      %115 = vmatpush1.msra.mxu0 0.0
      %116 = vmatprep.subr.mxu0 0.0
      %117 = vmatpush1.msra.mxu0 0.0
      %118 = vmatprep.subr.mxu0 0.0
      %119 = vmatpush1.msra.mxu0 0.0
      %120 = vmatprep.subr.mxu0 0.0
      %121 = vmatpush1.msra.mxu0 0.0
      %122 = vmatprep.subr.mxu0 0.0
      %123 = vmatpush1.msra.mxu0 0.0
      %124 = vmatprep.subr.mxu0 0.0
      %125 = vmatpush1.msra.mxu0 0.0
      %126 = vmatprep.subr.mxu0 0.0
      %127 = vmatpush1.msra.mxu0 0.0
      %128 = vmatprep.subr.mxu0 0.0
      %129 = vmatpush1.msra.mxu0 0.0
      %130 = vmatprep.subr.mxu0 0.0
      %131 = vmatpush1.msra.mxu0 0.0
      %132 = vmatprep.subr.mxu0 0.0
      %133 = vmatpush1.msra.mxu0 0.0
      %134 = vmatprep.subr.mxu0 0.0
      %135 = vmatpush1.msra.mxu0 0.0
      %136 = vmatprep.subr.mxu0 0.0
      %137 = vmatpush1.msra.mxu0 0.0
      %138 = vmatprep.subr.mxu0 0.0
      %139 = vmatpush1.msra.mxu0 0.0
      %140 = vmatprep.subr.mxu0 0.0
      %141 = vmatpush1.msra.mxu0 0.0
      %142 = vmatprep.subr.mxu0 0.0
      %143 = vmatpush1.msra.mxu0 0.0
      %144 = vmatprep.subr.mxu0 0.0
      %145 = vmatpush1.msra.mxu0 0.0
      %146 = vmatprep.mubr.f32.mxu0 0.0
      %147 = vmatmul.mubr.f32.gmra.mrb[0].mxu0 %v80
      %v148 = vpop.f32.mrb[0].mxu0
      %v149 = vadd.f32 %v77, %v148
      %v150 = vpop.f32.mrb[0].mxu0
      %151 = vdwg.mxu0
      %vm152 = vcmask 25600
      %153 = vst.msk [vmem:[#allocation3] sm:$0x3] %vm152, %v149
    $region25: #{tpu_custom_call.1} parent=1 // pred_fallthru
      _
    // Predicated region
    $region26: #{tpu_custom_call.1} parent=1 // pred_check
      _
    $region27: #{tpu_custom_call.1} parent=1 // pred_check_branch
      %155 = sbr.rel (0) target = $region29
    $region28: #{tpu_custom_call.1} parent=1 // pred_region
      %s157 = ssub.s32 32, 32
      %158 = vsyncadd [#allocation4], %s157
      %s160 = sshll.u32 [#allocation3], 4
      %s161 = int_to_ptr.vmem [resolvable:$true] %s160
      %163 = dma.vmem_to_hbm [thread:$0]  %s161, 32, %s4, [#allocation4]
    $region29: #{tpu_custom_call.1} parent=1 // pred_fallthru
      _
    // Predicated region
    $region30: #{tpu_custom_call.1} parent=1 // pred_check
      _
    $region31: #{tpu_custom_call.1} parent=1 // pred_check_branch
      %165 = sbr.rel (0) target = $region33
    $region32: #{tpu_custom_call.1} parent=1 // pred_region
      %166 = dma.done [#allocation4], 32
    $region33: #{tpu_custom_call.1} parent=1 // pred_fallthru
      _
    %167 = vsyncpa [#allocation4], 1

</llo_original>
